<compile_context>
chip_gen: v6e
topology: v6e:2x2x1
jax: 0.10.0
libtpu: 0.0.40
codegen_flags: <defaults>
</compile_context>

<pallas_src>
import functools
import math

import jax
import jax.numpy as jnp
from jax import lax
from jax.experimental import pallas as pl
from jax.experimental.pallas import tpu as pltpu


# ---------------------------------------------------------------------------
# Buffer construction — matches the torch __init__ exactly (note: log(100), as
# in the reference module, NOT the usual log(10000)).
# ---------------------------------------------------------------------------
def make_pos_embedding(emb_size: int, maxlen: int = 200) -> jnp.ndarray:
    pos = jnp.arange(0, maxlen, dtype=jnp.float32).reshape(maxlen, 1)          # (maxlen, 1)
    den = jnp.exp(-jnp.arange(0, emb_size, 2, dtype=jnp.float32)
                  * math.log(100.0) / emb_size)                                # (E//2,)
    sin_part = jnp.sin(pos * den)                                              # even cols
    cos_part = jnp.cos(pos * den)                                              # odd cols
    pe = jnp.stack([sin_part, cos_part], axis=-1).reshape(maxlen, emb_size)    # interleave
    return pe[:, None, :]                                                      # (maxlen, 1, E)


# ---------------------------------------------------------------------------
# Kernel: out = dropout(x + pe), elementwise, on a (TS, B*E) lane-dense slab.
# ---------------------------------------------------------------------------
def _pe_dropout_kernel(seed_ref, x_ref, pe_ref, o_ref, *, p: float, batch: int):
    x = x_ref[...]                               # (TS, B*E)
    pe = pe_ref[...]                             # (TS, E)
    if batch > 1:
        # Replicate PE across the batch groups packed along the lane axis:
        # x row layout is [b=0 E values | b=1 E values | ...].
        pe = jnp.concatenate([pe] * batch, axis=-1)
    summed = x + pe

    if p > 0.0:
        blk_rows, n_cols = x_ref.shape
        # Global element index -> mask is independent of the tiling / grid.
        row0 = pl.program_id(0) * blk_rows
        r = lax.broadcasted_iota(jnp.int32, (blk_rows, n_cols), 0) + row0
        c = lax.broadcasted_iota(jnp.int32, (blk_rows, n_cols), 1)
        idx = r * n_cols + c

        # int32 murmur-style mixer (arithmetic shift + mask == logical shift).
        seed = seed_ref[0]
        h = idx * jnp.int32(-1640531527) + seed          # 0x9E3779B9
        h = h ^ ((h >> 16) & 0xFFFF)
        h = h * jnp.int32(-2048144789)                   # 0x85EBCA6B
        h = h ^ ((h >> 13) & 0x7FFFF)
        h = h * jnp.int32(-1028477379)                   # 0xC2B2AE35
        h = h ^ ((h >> 16) & 0xFFFF)
        bits24 = h & 0x00FFFFFF                          # uniform in [0, 2^24)

        threshold = int(round(p * (1 << 24)))            # keep prob = 1 - p
        scale = 1.0 / (1.0 - p)
        summed = jnp.where(bits24 >= threshold, summed * scale, 0.0)

    o_ref[...] = summed.astype(o_ref.dtype)


def _choose_row_block(n_rows: int, row_bytes: int, target_bytes: int = 2 << 20) -> int:
    """Row-block that keeps each pipelined buffer at a few MiB (safe on v7x's
    64 MiB VMEM, big enough to hit ~85% of HBM roofline on v5e/v6e)."""
    if n_rows <= 8:
        return n_rows
    ts = max(8, target_bytes // max(row_bytes, 1))
    ts = (ts // 8) * 8
    ts = min(ts, n_rows)
    return n_rows if ts >= n_rows else max(8, ts)


def positional_encoding_forward(token_embedding: jnp.ndarray,
                                pos_embedding: jnp.ndarray,
                                dropout_p: float,
                                seed: int = 0) -> jnp.ndarray:
    """token_embedding: (S, B, E); pos_embedding: (maxlen, 1, E).
    dropout_p == 0.0 reproduces eval-mode (identity dropout)."""
    S, B, E = token_embedding.shape
    x2d = token_embedding.reshape(S, B * E)          # free, contiguous reshape
    pe2d = pos_embedding[:S].reshape(S, E)           # slice buffer to seq length
    seed_arr = jnp.asarray([seed], dtype=jnp.int32)

    row_bytes = B * E * token_embedding.dtype.itemsize
    ts = _choose_row_block(S, row_bytes)
    grid = (pl.cdiv(S, ts),)

    kernel = functools.partial(_pe_dropout_kernel, p=float(dropout_p), batch=B)

    out2d = pl.pallas_call(
        kernel,
        out_shape=jax.ShapeDtypeStruct((S, B * E), token_embedding.dtype),
        grid=grid,
        in_specs=[
            pl.BlockSpec(memory_space=pltpu.MemorySpace.SMEM),       # seed scalar
            pl.BlockSpec((ts, B * E), lambda i: (i, 0)),             # token embedding slab
            pl.BlockSpec((ts, E), lambda i: (i, 0)),                 # PE rows (read once)
        ],
        out_specs=pl.BlockSpec((ts, B * E), lambda i: (i, 0)),
        input_output_aliases={1: 0},                                 # write back over x slab
        compiler_params=pltpu.CompilerParams(
            dimension_semantics=("parallel",)),                      # megacore on v7x
    )(seed_arr, x2d, pe2d)

    return out2d.reshape(S, B, E)


if __name__ == "__main__":
    emb_size = 32
    maxlen = 200
    seq_len = 8
    batch = 2
    dropout_p = 0.1

    key = jax.random.PRNGKey(0)
    x = jax.random.normal(key, (seq_len, batch, emb_size), dtype=jnp.float32)
    pos_embedding = make_pos_embedding(emb_size, maxlen)

    ref = x + pos_embedding[:seq_len]                         # (S, B, E)

    # Eval-mode (identity dropout): out == x + pe exactly.
    out_eval = positional_encoding_forward(x, pos_embedding, dropout_p=0.0)
    out_eval = jax.block_until_ready(out_eval)
    assert out_eval.shape == (seq_len, batch, emb_size)
    assert jnp.allclose(out_eval, ref, atol=1e-6, rtol=1e-6), "mismatch vs reference add"

    # Train-mode forward with dropout.
    out_train = positional_encoding_forward(x, pos_embedding, dropout_p=dropout_p, seed=1234)
    out_train = jax.block_until_ready(out_train)
    assert out_train.shape == (seq_len, batch, emb_size)
    dropped = (out_train == 0.0)
    frac = float(jnp.mean(dropped.astype(jnp.float32)))
    assert 0.0 < frac < 0.5, f"unexpected drop fraction {frac}"
    kept = ~dropped
    assert jnp.allclose(jnp.where(kept, out_train, 0.0),
                        jnp.where(kept, ref / (1.0 - dropout_p), 0.0),
                        atol=1e-5, rtol=1e-5), "kept values not scaled correctly"

    print("KERNEL_OK")
</pallas_src>

<mosaic_0001>
module attributes {stable_mosaic.version = 11 : i64} {
  func.func @_pe_dropout_kernel(%arg0: i32, %arg1: memref<1xi32, #tpu.memory_space<smem>>, %arg2: memref<8x64xf32, #tpu.memory_space<vmem>>, %arg3: memref<8x32xf32, #tpu.memory_space<vmem>>, %arg4: memref<8x64xf32, #tpu.memory_space<vmem>>) attributes {dimension_semantics = [#tpu.dimension_semantics<parallel>], iteration_bounds = array<i64: 1>, scalar_prefetch = 0 : i64, scratch_operands = 0 : i64, tpu.core_type = #tpu.core_type<tc>, window_params = [{transform_indices = @transform_0, window_bounds = array<i64: 1>}, {transform_indices = @transform_1, window_bounds = array<i64: 8, 64>}, {transform_indices = @transform_2, window_bounds = array<i64: 8, 32>}, {transform_indices = @transform_3, window_bounds = array<i64: 8, 64>}]} {
    %c0 = arith.constant 0 : index
    %c0_0 = arith.constant 0 : index
    %0 = vector.load %arg2[%c0, %c0_0] : memref<8x64xf32, #tpu.memory_space<vmem>>, vector<8x64xf32>
    %c0_1 = arith.constant 0 : index
    %c0_2 = arith.constant 0 : index
    %1 = vector.load %arg3[%c0_1, %c0_2] : memref<8x32xf32, #tpu.memory_space<vmem>>, vector<8x32xf32>
    %2 = tpu.concatenate %1, %1 in 1 : vector<8x32xf32>, vector<8x32xf32> -> vector<8x64xf32>
    %3 = arith.addf %0, %2 : vector<8x64xf32>
    %c0_3 = arith.constant 0 : index
    %c0_4 = arith.constant 0 : index
    %4 = vector.load %arg4[%c0_3, %c0_4] : memref<8x64xf32, #tpu.memory_space<vmem>>, vector<8x64xf32>
    tpu.vector_store %arg4[%c0_3, %c0_4], %3 {strides = array<i32>} : memref<8x64xf32, #tpu.memory_space<vmem>>, vector<8x64xf32>,
    return
  }
  func.func @transform_0(%arg0: i32) -> i32 {
    %c0_i32 = arith.constant 0 : i32
    %c0_i32_0 = arith.constant 0 : i32
    return %c0_i32 : i32
  }
  func.func @transform_1(%arg0: i32) -> (i32, i32) {
    %c0_i32 = arith.constant 0 : i32
    %c0_i32_0 = arith.constant 0 : i32
    return %arg0, %c0_i32 : i32, i32
  }
  func.func @transform_2(%arg0: i32) -> (i32, i32) {
    %c0_i32 = arith.constant 0 : i32
    %c0_i32_0 = arith.constant 0 : i32
    return %arg0, %c0_i32 : i32, i32
  }
  func.func @transform_3(%arg0: i32) -> (i32, i32) {
    %c0_i32 = arith.constant 0 : i32
    %c0_i32_0 = arith.constant 0 : i32
    return %arg0, %c0_i32 : i32, i32
  }
}

</mosaic_0001>

<llo_original>
// kernel: tpu_custom_call.1
$region0: #{tpu_custom_call.1}
  #allocation0 [shape = 'u32[]', space=smem, size = 0x4, offset = 0x4, fixed_abs, tag = 'smem constant byte address 0x4 - core index']
  #allocation1 [shape = 'u32[144,128]{1,0:T(1,128)}', space=vmem, size = 0x12000, scoped, tag = 'internal scratch']
  #allocation2 [shape = 's32[1]{0:T(128)S(6)}', space=smem, size = 0x200, scoped, tag = 'scoped memory for tpu_custom_call.1']
  %s0 = inlined_call_operand.<no memory space> [shape: s32[1], index: 0, kind: input, shape index: {}]
  %s1 = inlined_call_operand.hbm [shape: f32[8,64], index: 1, kind: input, shape index: {}, may-alias: {1,3}]
  %s2 = inlined_call_operand.vmem [shape: f32[8,32], index: 2, kind: input, shape index: {}]
  %s3 = inlined_call_operand.hbm [shape: f32[8,64], index: 3, kind: output, shape index: {}, may-alias: {1,3}]
  %s4 = sld [smem:[#allocation0]]
  $region26: #{tpu_custom_call.1} parent=0
    _
  %s6 = ssub.s32 1, %s4
  %s7 = scalar_select 0, %s6, %s4
  %8 = sst [smem:[#allocation2]] %s0
  $region1: #{tpu_custom_call.1} parent=0
    #allocation3 [shape = 'u8[4096]{0}', space=vmem, size = 0x1000, scoped, tag = 'input window, operand 1, single buffered']
    #allocation4 [shape = 's32[1]{0}', space=sflag, size = 0x4, scoped, tag = 'scoped memory for tpu_custom_call.1']
    #allocation5 [shape = 's32[1]{0}', space=sflag, size = 0x4, scoped, tag = 'scoped memory for tpu_custom_call.1']
    #allocation6 [shape = 'u8[4096]{0}', space=vmem, size = 0x1000, scoped, tag = 'output window, operand 0, single buffered']
    %9 = vsyncpa [#allocation4], 0
    %10 = vsyncpa [#allocation5], 0
    // Predicated region
    $region2: #{tpu_custom_call.1} parent=1 // pred_check
      _
    $region3: #{tpu_custom_call.1} parent=1 // pred_check_branch
      %12 = sbr.rel (0) target = $region5
    $region4: #{tpu_custom_call.1} parent=1 // pred_region
      _
    $region5: #{tpu_custom_call.1} parent=1 // pred_fallthru
      _
    // Predicated region
    $region6: #{tpu_custom_call.1} parent=1 // pred_check
      _
    $region7: #{tpu_custom_call.1} parent=1 // pred_check_branch
      %14 = sbr.rel (0) target = $region9
    $region8: #{tpu_custom_call.1} parent=1 // pred_region
      %s16 = ssub.s32 128, 128
      %17 = vsyncadd [#allocation4], %s16
      %s19 = sshll.u32 [#allocation3], 4
      %s20 = int_to_ptr.vmem [resolvable:$true] %s19
      %22 = dma.hbm_to_vmem [thread:$0]  %s1, 128, %s20, [#allocation4]
    $region9: #{tpu_custom_call.1} parent=1 // pred_fallthru
      _
    // Predicated region
    $region10: #{tpu_custom_call.1} parent=1 // pred_check
      _
    $region11: #{tpu_custom_call.1} parent=1 // pred_check_branch
      %24 = sbr.rel (0) target = $region13
    $region12: #{tpu_custom_call.1} parent=1 // pred_region
      _
    $region13: #{tpu_custom_call.1} parent=1 // pred_fallthru
      _
    // Predicated region
    $region14: #{tpu_custom_call.1} parent=1 // pred_check
      _
    $region15: #{tpu_custom_call.1} parent=1 // pred_check_branch
      %26 = sbr.rel (0) target = $region17
    $region16: #{tpu_custom_call.1} parent=1 // pred_region
      %27 = dma.done [#allocation4], 128
    $region17: #{tpu_custom_call.1} parent=1 // pred_fallthru
      _
    %v28 = vld [vmem:[#allocation3] sm:$0xff]
    %v29 = vld [vmem:[%s2] sm:$0xff]
    %31 = vrot.lane.b32.xlu0 %v29, 32
    %v32 = vpop.permute.xlu0 %31
    %vm34 = vcmask 261120
    %v35 = vsel %vm34, %v29, %v32
    %v36 = vadd.f32 %v28, %v35
    %vm37 = vcmask 523264
    %38 = vst.msk [vmem:[#allocation6] sm:$0xff] %vm37, %v36
    // Predicated region
    $region18: #{tpu_custom_call.1} parent=1 // pred_check
      _
    $region19: #{tpu_custom_call.1} parent=1 // pred_check_branch
      %40 = sbr.rel (0) target = $region21
    $region20: #{tpu_custom_call.1} parent=1 // pred_region
      %s42 = ssub.s32 128, 128
      %43 = vsyncadd [#allocation5], %s42
      %s45 = sshll.u32 [#allocation6], 4
      %s46 = int_to_ptr.vmem [resolvable:$true] %s45
      %48 = dma.vmem_to_hbm [thread:$0]  %s46, 128, %s3, [#allocation5]
    $region21: #{tpu_custom_call.1} parent=1 // pred_fallthru
      _
    // Predicated region
    $region22: #{tpu_custom_call.1} parent=1 // pred_check
      _
    $region23: #{tpu_custom_call.1} parent=1 // pred_check_branch
      %50 = sbr.rel (0) target = $region25
    $region24: #{tpu_custom_call.1} parent=1 // pred_region
      %51 = dma.done [#allocation5], 128
    $region25: #{tpu_custom_call.1} parent=1 // pred_fallthru
      _
    %52 = vsyncpa [#allocation4], 1
    %53 = vsyncpa [#allocation5], 1

</llo_original>
